<compile_context>
chip_gen: v5e
topology: v5e:2x2
jax: 0.10.0
libtpu: 0.0.40
codegen_flags: <defaults>
</compile_context>

<pallas_src>
import jax
import jax.numpy as jnp
from jax.experimental import pallas as pl
from jax.experimental.pallas import tpu as pltpu

HIDDEN = 128


def critic_kernel(state_ref, action_ref, w1s_ref, w1a_ref, b1_ref,
                  w2_ref, b2_ref, w3_ref, b3_ref, o_ref):
    # Layer 1: fused concat via column-split W1 (no HBM roundtrip for the
    # concatenated activation, no in-kernel lane shuffles).  bf16 MXU inputs,
    # f32 accumulation + bias/relu epilogue.  The astype is a no-op when the
    # caller already supplies bf16 inputs.
    s = state_ref[...].astype(jnp.bfloat16)
    a = action_ref[...].astype(jnp.bfloat16)
    h1 = (jnp.dot(s, w1s_ref[...], preferred_element_type=jnp.float32)
          + jnp.dot(a, w1a_ref[...], preferred_element_type=jnp.float32)
          + b1_ref[...])
    h1 = jnp.maximum(h1, 0.0)

    # Layer 2 (128 -> 128).
    h2 = jnp.dot(h1.astype(jnp.bfloat16), w2_ref[...],
                 preferred_element_type=jnp.float32) + b2_ref[...]
    h2 = jnp.maximum(h2, 0.0)

    # Layer 3 (128 -> 1): single MXU push per 8-row group (guaranteed-cheap on
    # the shared vector-extended slot); b3 is an SMEM scalar added in f32.
    out = jnp.dot(h2.astype(jnp.bfloat16), w3_ref[...],
                  preferred_element_type=jnp.float32) + b3_ref[0, 0]
    o_ref[...] = out.astype(o_ref.dtype)


def init_params(key, in_dim, hidden=HIDDEN, init_w=0.003):
    """Mirror nn.Linear defaults + out-layer override. Weights stored [in, out]."""
    k1, k2, k3, k4, k5, k6 = jax.random.split(key, 6)

    def uniform(k, shape, bound):
        return jax.random.uniform(k, shape, jnp.float32, minval=-bound, maxval=bound)

    bnd1 = 1.0 / jnp.sqrt(in_dim)
    bnd2 = 1.0 / jnp.sqrt(hidden)
    w1 = uniform(k1, (in_dim, hidden), bnd1)
    b1 = uniform(k2, (1, hidden), bnd1)
    w2 = uniform(k3, (hidden, hidden), bnd2)
    b2 = uniform(k4, (1, hidden), bnd2)
    w3 = uniform(k5, (hidden, 1), init_w)
    b3 = uniform(k6, (1, 1), init_w)
    return (w1, b1, w2, b2, w3, b3)


def prepare_params(params, state_dim):
    """One-time prep: split W1 by (state|action) columns, bf16 MXU weights,
    W3 kept as a (H, 1) bf16 column for the MXU layer-3, b3 as SMEM scalar."""
    w1, b1, w2, b2, w3, b3 = params
    return (
        w1[:state_dim].astype(jnp.bfloat16),          # w1_state  (sd, H)
        w1[state_dim:].astype(jnp.bfloat16),          # w1_action (ad, H)
        b1.astype(jnp.float32),                       # (1, H)
        w2.astype(jnp.bfloat16),                      # (H, H)
        b2.astype(jnp.float32),                       # (1, H)
        w3.astype(jnp.bfloat16),                      # (H, 1)
        b3.reshape(1, 1).astype(jnp.float32),         # (1, 1) -> SMEM scalar
    )


def _choose_tiles(batch, tile_b):
    """Pick (TB, padded_B). TB is a multiple of 8 (or the full batch when a
    single tile is used); >=2 grid steps are forced for B >= 16 so the
    'parallel' axis can shard across both TensorCores on v7x."""
    tile_b = max(8, (int(tile_b) // 8) * 8)           # (8,128) second-minor rule
    num_tiles = -(-batch // tile_b)
    if num_tiles == 1 and batch >= 16:
        num_tiles = 2
    if num_tiles == 1:
        return batch, batch                           # full-dim block, no padding
    tb = -(-batch // num_tiles)
    tb = ((tb + 7) // 8) * 8
    return tb, tb * num_tiles


def _vmem_limit_bytes(tb, sd, ad, in_itemsize):
    """Conservative per-kernel VMEM footprint -> scoped-limit request."""
    in_dim = sd + ad
    inputs = 2 * tb * in_dim * in_itemsize            # double-buffered input tiles
    acts = tb * HIDDEN * 16                           # h1/h2 f32 + bf16 cast copies
    outs = 2 * tb * 4                                 # double-buffered output tile
    weights = 2 * ((in_dim + HIDDEN) * HIDDEN + HIDDEN) * 2 + 4 * (2 * HIDDEN + 1)
    est = inputs + acts + outs + weights
    return int(min(max(est * 3 // 2 + (2 << 20), 16 << 20), 48 << 20))


def critic_forward(state, action, prepared_params, *, tile_b=8192):
    """Fused 3-layer critic MLP. `prepared_params` comes from prepare_params.
    state/action may be f32 or bf16 (bf16 halves input DMA bytes)."""
    w1s, w1a, b1, w2, b2, w3, b3 = prepared_params
    B, sd = state.shape
    ad = action.shape[1]

    TB, Bp = _choose_tiles(B, tile_b)
    if Bp != B:
        pad = Bp - B
        state = jnp.pad(state, ((0, pad), (0, 0)))
        action = jnp.pad(action, ((0, pad), (0, 0)))

    grid = (Bp // TB,)
    const2 = lambda i: (0, 0)

    in_specs = [
        pl.BlockSpec((TB, sd), lambda i: (i, 0)),              # state tile
        pl.BlockSpec((TB, ad), lambda i: (i, 0)),              # action tile
        pl.BlockSpec((sd, HIDDEN), const2),                    # w1_state (resident)
        pl.BlockSpec((ad, HIDDEN), const2),                    # w1_action (resident)
        pl.BlockSpec((1, HIDDEN), const2),                     # b1
        pl.BlockSpec((HIDDEN, HIDDEN), const2),                # w2
        pl.BlockSpec((1, HIDDEN), const2),                     # b2
        pl.BlockSpec((HIDDEN, 1), const2),                     # w3 column (MXU)
        pl.BlockSpec(memory_space=pltpu.MemorySpace.SMEM),     # b3 scalar
    ]
    out_specs = pl.BlockSpec((TB, 1), lambda i: (i, 0))

    in_dim = sd + ad
    itemsize = state.dtype.itemsize
    flops = 2 * Bp * (in_dim * HIDDEN + HIDDEN * HIDDEN + HIDDEN)
    bytes_accessed = (Bp * in_dim * itemsize + Bp * 4                       # activations in/out
                      + (in_dim * HIDDEN + HIDDEN * HIDDEN + HIDDEN) * 2    # bf16 weights
                      + (2 * HIDDEN + 1) * 4)                               # biases

    out = pl.pallas_call(
        critic_kernel,
        out_shape=jax.ShapeDtypeStruct((Bp, 1), jnp.float32),
        grid_spec=pltpu.PrefetchScalarGridSpec(
            num_scalar_prefetch=0,
            grid=grid,
            in_specs=in_specs,
            out_specs=out_specs,
        ),
        compiler_params=pltpu.CompilerParams(
            dimension_semantics=("parallel",),
            vmem_limit_bytes=_vmem_limit_bytes(TB, sd, ad, itemsize)),
        cost_estimate=pl.CostEstimate(
            flops=flops, transcendentals=0, bytes_accessed=bytes_accessed),
    )(state, action, w1s, w1a, b1, w2, b2, w3, b3)

    return out[:B] if Bp != B else out


def critic_reference(state, action, params):
    """Pure-JAX f32 reference matching the PyTorch module."""
    x = jnp.concatenate([state, action], axis=-1)
    w1, b1, w2, b2, w3, b3 = params
    h1 = jnp.maximum(x @ w1 + b1, 0.0)
    h2 = jnp.maximum(h1 @ w2 + b2, 0.0)
    return h2 @ w3 + b3


if __name__ == "__main__":
    key = jax.random.PRNGKey(0)
    k_state, k_action, k_params = jax.random.split(key, 3)

    batch = 2
    state_dim = 24
    action_dim = 8
    in_dim = state_dim + action_dim                      # 32

    state = jax.random.normal(k_state, (batch, state_dim), jnp.float32)
    action = jax.random.normal(k_action, (batch, action_dim), jnp.float32)
    params = init_params(k_params, in_dim)
    prepped = prepare_params(params, state_dim)

    # Single-tile path (grid == 1, full-dim block).
    value = jax.block_until_ready(critic_forward(state, action, prepped))
    ref = critic_reference(state, action, params)
    assert value.shape == (batch, 1), value.shape
    # bf16 MXU inputs/weights -> loosened tolerance vs the f32 reference.
    assert jnp.allclose(value, ref, atol=5e-3, rtol=2e-2), (value, ref)

    # Multi-tile + padded-batch path (grid > 1, 8-aligned TB, minimal padding).
    batch2 = 300
    k_s2, k_a2 = jax.random.split(jax.random.PRNGKey(1))
    state2 = jax.random.normal(k_s2, (batch2, state_dim), jnp.float32)
    action2 = jax.random.normal(k_a2, (batch2, action_dim), jnp.float32)
    value2 = jax.block_until_ready(
        critic_forward(state2, action2, prepped, tile_b=128))
    ref2 = critic_reference(state2, action2, params)
    assert value2.shape == (batch2, 1), value2.shape
    assert jnp.allclose(value2, ref2, atol=5e-3, rtol=2e-2)

    # bf16-input fast path: no wrapper-side cast, kernel casts become no-ops.
    value_bf16 = jax.block_until_ready(
        critic_forward(state2.astype(jnp.bfloat16), action2.astype(jnp.bfloat16),
                       prepped, tile_b=128))
    assert value_bf16.shape == (batch2, 1), value_bf16.shape
    assert jnp.allclose(value_bf16, ref2, atol=5e-2, rtol=1e-1)

    print("KERNEL_OK")
</pallas_src>

<mosaic_0001>
module attributes {stable_mosaic.version = 11 : i64} {
  func.func @critic_kernel(%arg0: i32, %arg1: memref<2x24xf32, #tpu.memory_space<vmem>>, %arg2: memref<2x8xf32, #tpu.memory_space<vmem>>, %arg3: memref<24x128xbf16, #tpu.memory_space<vmem>>, %arg4: memref<8x128xbf16, #tpu.memory_space<vmem>>, %arg5: memref<1x128xf32, #tpu.memory_space<vmem>>, %arg6: memref<128x128xbf16, #tpu.memory_space<vmem>>, %arg7: memref<1x128xf32, #tpu.memory_space<vmem>>, %arg8: memref<128x1xbf16, #tpu.memory_space<vmem>>, %arg9: memref<1x1xf32, #tpu.memory_space<smem>>, %arg10: memref<2x1xf32, #tpu.memory_space<vmem>>) attributes {dimension_semantics = [#tpu.dimension_semantics<parallel>], iteration_bounds = array<i64: 1>, scalar_prefetch = 0 : i64, scratch_operands = 0 : i64, tpu.core_type = #tpu.core_type<tc>, window_params = [{transform_indices = @transform_0, window_bounds = array<i64: 2, 24>}, {transform_indices = @transform_1, window_bounds = array<i64: 2, 8>}, {pipeline_mode = #tpu.pipeline_mode<synchronous>, transform_indices = @transform_2, window_bounds = array<i64: 24, 128>}, {pipeline_mode = #tpu.pipeline_mode<synchronous>, transform_indices = @transform_3, window_bounds = array<i64: 8, 128>}, {pipeline_mode = #tpu.pipeline_mode<synchronous>, transform_indices = @transform_4, window_bounds = array<i64: 1, 128>}, {pipeline_mode = #tpu.pipeline_mode<synchronous>, transform_indices = @transform_5, window_bounds = array<i64: 128, 128>}, {pipeline_mode = #tpu.pipeline_mode<synchronous>, transform_indices = @transform_6, window_bounds = array<i64: 1, 128>}, {pipeline_mode = #tpu.pipeline_mode<synchronous>, transform_indices = @transform_7, window_bounds = array<i64: 128, 1>}, {transform_indices = @transform_8, window_bounds = array<i64: 1, 1>}, {transform_indices = @transform_9, window_bounds = array<i64: 2, 1>}]} {
    %c0 = arith.constant 0 : index
    %c0_0 = arith.constant 0 : index
    %0 = vector.load %arg1[%c0, %c0_0] : memref<2x24xf32, #tpu.memory_space<vmem>>, vector<2x24xf32>
    %1 = arith.truncf %0 : vector<2x24xf32> to vector<2x24xbf16>
    %c0_1 = arith.constant 0 : index
    %c0_2 = arith.constant 0 : index
    %2 = vector.load %arg2[%c0_1, %c0_2] : memref<2x8xf32, #tpu.memory_space<vmem>>, vector<2x8xf32>
    %3 = arith.truncf %2 : vector<2x8xf32> to vector<2x8xbf16>
    %c0_3 = arith.constant 0 : index
    %c0_4 = arith.constant 0 : index
    %4 = vector.load %arg3[%c0_3, %c0_4] : memref<24x128xbf16, #tpu.memory_space<vmem>>, vector<24x128xbf16>
    %cst = arith.constant dense<0.000000e+00> : vector<2x128xf32>
    %5 = tpu.matmul %1, %4, %cst {dimension_numbers = #tpu.dot_dimension_numbers<[1], [0], [0], [1], [0, 0, 1, 1], [], []>} : vector<2x24xbf16>, vector<24x128xbf16>, vector<2x128xf32> -> vector<2x128xf32>
    %c0_5 = arith.constant 0 : index
    %c0_6 = arith.constant 0 : index
    %6 = vector.load %arg4[%c0_5, %c0_6] : memref<8x128xbf16, #tpu.memory_space<vmem>>, vector<8x128xbf16>
    %cst_7 = arith.constant dense<0.000000e+00> : vector<2x128xf32>
    %7 = tpu.matmul %3, %6, %cst_7 {dimension_numbers = #tpu.dot_dimension_numbers<[1], [0], [0], [1], [0, 0, 1, 1], [], []>} : vector<2x8xbf16>, vector<8x128xbf16>, vector<2x128xf32> -> vector<2x128xf32>
    %8 = arith.addf %5, %7 : vector<2x128xf32>
    %c0_8 = arith.constant 0 : index
    %c0_9 = arith.constant 0 : index
    %9 = vector.load %arg5[%c0_8, %c0_9] : memref<1x128xf32, #tpu.memory_space<vmem>>, vector<1x128xf32>
    %10 = vector.broadcast %9 : vector<1x128xf32> to vector<2x128xf32>
    %11 = arith.addf %8, %10 : vector<2x128xf32>
    %cst_10 = arith.constant 0.000000e+00 : f32
    %12 = vector.broadcast %cst_10 : f32 to vector<2x128xf32>
    %13 = arith.maximumf %11, %12 : vector<2x128xf32>
    %14 = arith.truncf %13 : vector<2x128xf32> to vector<2x128xbf16>
    %c0_11 = arith.constant 0 : index
    %c0_12 = arith.constant 0 : index
    %15 = vector.load %arg6[%c0_11, %c0_12] : memref<128x128xbf16, #tpu.memory_space<vmem>>, vector<128x128xbf16>
    %cst_13 = arith.constant dense<0.000000e+00> : vector<2x128xf32>
    %16 = tpu.matmul %14, %15, %cst_13 {dimension_numbers = #tpu.dot_dimension_numbers<[1], [0], [0], [1], [0, 0, 1, 1], [], []>} : vector<2x128xbf16>, vector<128x128xbf16>, vector<2x128xf32> -> vector<2x128xf32>
    %c0_14 = arith.constant 0 : index
    %c0_15 = arith.constant 0 : index
    %17 = vector.load %arg7[%c0_14, %c0_15] : memref<1x128xf32, #tpu.memory_space<vmem>>, vector<1x128xf32>
    %18 = vector.broadcast %17 : vector<1x128xf32> to vector<2x128xf32>
    %19 = arith.addf %16, %18 : vector<2x128xf32>
    %cst_16 = arith.constant 0.000000e+00 : f32
    %20 = vector.broadcast %cst_16 : f32 to vector<2x128xf32>
    %21 = arith.maximumf %19, %20 : vector<2x128xf32>
    %22 = arith.truncf %21 : vector<2x128xf32> to vector<2x128xbf16>
    %c0_17 = arith.constant 0 : index
    %c0_18 = arith.constant 0 : index
    %23 = vector.load %arg8[%c0_17, %c0_18] : memref<128x1xbf16, #tpu.memory_space<vmem>>, vector<128x1xbf16>
    %cst_19 = arith.constant dense<0.000000e+00> : vector<2x1xf32>
    %24 = tpu.matmul %22, %23, %cst_19 {dimension_numbers = #tpu.dot_dimension_numbers<[1], [0], [0], [1], [0, 0, 1, 1], [], []>} : vector<2x128xbf16>, vector<128x1xbf16>, vector<2x1xf32> -> vector<2x1xf32>
    %c0_20 = arith.constant 0 : index
    %c0_21 = arith.constant 0 : index
    %25 = memref.load %arg9[%c0_20, %c0_21] : memref<1x1xf32, #tpu.memory_space<smem>>
    %26 = vector.broadcast %25 : f32 to vector<2x1xf32>
    %27 = arith.addf %24, %26 : vector<2x1xf32>
    %c0_22 = arith.constant 0 : index
    %c0_23 = arith.constant 0 : index
    %28 = vector.load %arg10[%c0_22, %c0_23] : memref<2x1xf32, #tpu.memory_space<vmem>>, vector<2x1xf32>
    tpu.vector_store %arg10[%c0_22, %c0_23], %27 {strides = array<i32>} : memref<2x1xf32, #tpu.memory_space<vmem>>, vector<2x1xf32>,
    return
  }
  func.func @transform_0(%arg0: i32) -> (i32, i32) {
    %c0_i32 = arith.constant 0 : i32
    %c0_i32_0 = arith.constant 0 : i32
    return %arg0, %c0_i32 : i32, i32
  }
  func.func @transform_1(%arg0: i32) -> (i32, i32) {
    %c0_i32 = arith.constant 0 : i32
    %c0_i32_0 = arith.constant 0 : i32
    return %arg0, %c0_i32 : i32, i32
  }
  func.func @transform_2(%arg0: i32) -> (i32, i32) {
    %c0_i32 = arith.constant 0 : i32
    %c0_i32_0 = arith.constant 0 : i32
    %c0_i32_1 = arith.constant 0 : i32
    return %c0_i32, %c0_i32_0 : i32, i32
  }
  func.func @transform_3(%arg0: i32) -> (i32, i32) {
    %c0_i32 = arith.constant 0 : i32
    %c0_i32_0 = arith.constant 0 : i32
    %c0_i32_1 = arith.constant 0 : i32
    return %c0_i32, %c0_i32_0 : i32, i32
  }
  func.func @transform_4(%arg0: i32) -> (i32, i32) {
    %c0_i32 = arith.constant 0 : i32
    %c0_i32_0 = arith.constant 0 : i32
    %c0_i32_1 = arith.constant 0 : i32
    return %c0_i32, %c0_i32_0 : i32, i32
  }
  func.func @transform_5(%arg0: i32) -> (i32, i32) {
    %c0_i32 = arith.constant 0 : i32
    %c0_i32_0 = arith.constant 0 : i32
    %c0_i32_1 = arith.constant 0 : i32
    return %c0_i32, %c0_i32_0 : i32, i32
  }
  func.func @transform_6(%arg0: i32) -> (i32, i32) {
    %c0_i32 = arith.constant 0 : i32
    %c0_i32_0 = arith.constant 0 : i32
    %c0_i32_1 = arith.constant 0 : i32
    return %c0_i32, %c0_i32_0 : i32, i32
  }
  func.func @transform_7(%arg0: i32) -> (i32, i32) {
    %c0_i32 = arith.constant 0 : i32
    %c0_i32_0 = arith.constant 0 : i32
    %c0_i32_1 = arith.constant 0 : i32
    return %c0_i32, %c0_i32_0 : i32, i32
  }
  func.func @transform_8(%arg0: i32) -> (i32, i32) {
    %c0_i32 = arith.constant 0 : i32
    %c0_i32_0 = arith.constant 0 : i32
    %c0_i32_1 = arith.constant 0 : i32
    return %c0_i32, %c0_i32_0 : i32, i32
  }
  func.func @transform_9(%arg0: i32) -> (i32, i32) {
    %c0_i32 = arith.constant 0 : i32
    %c0_i32_0 = arith.constant 0 : i32
    return %arg0, %c0_i32 : i32, i32
  }
}

</mosaic_0001>

<llo_original>
// kernel: tpu_custom_call.1
$region0: #{tpu_custom_call.1}
  #allocation0 [shape = 'u32[]', space=smem, size = 0x4, offset = 0x4, fixed_abs, tag = 'smem constant byte address 0x4 - core index']
  #allocation1 [shape = 'u32[72,128]{1,0:T(1,128)}', space=vmem, size = 0x9000, scoped, tag = 'internal scratch']
  #allocation2 [shape = 'f32[1,1]{1,0:T(1,128)S(6)}', space=smem, size = 0x200, scoped, tag = 'scoped memory for tpu_custom_call.1']
  %s0 = inlined_call_operand.vmem [shape: f32[2,24], index: 0, kind: input, shape index: {}]
  %s1 = inlined_call_operand.hbm [shape: f32[2,8], index: 1, kind: input, shape index: {}]
  %s2 = inlined_call_operand.hbm [shape: bf16[24,128], index: 2, kind: input, shape index: {}]
  %s3 = inlined_call_operand.vmem [shape: bf16[8,128], index: 3, kind: input, shape index: {}]
  %s4 = inlined_call_operand.vmem [shape: f32[1,128], index: 4, kind: input, shape index: {}]
  %s5 = inlined_call_operand.vmem [shape: bf16[128,128], index: 5, kind: input, shape index: {}]
  %s6 = inlined_call_operand.hbm [shape: f32[1,128], index: 6, kind: input, shape index: {}]
  %s7 = inlined_call_operand.vmem [shape: bf16[128,1], index: 7, kind: input, shape index: {}]
  %s8 = inlined_call_operand.<no memory space> [shape: f32[1,1], index: 8, kind: input, shape index: {}]
  %s9 = inlined_call_operand.vmem [shape: f32[2,1], index: 9, kind: output, shape index: {}]
  %s10 = sld [smem:[#allocation0]]
  $region58: #{tpu_custom_call.1} parent=0
    _
  %s12 = ssub.s32 1, %s10
  %s13 = scalar_select 0, %s12, %s10
  %14 = sst [smem:[#allocation2]] %s8
  $region1: #{tpu_custom_call.1} parent=0
    #allocation3 [shape = 'u8[1024]{0}', space=vmem, size = 0x400, scoped, tag = 'input window, operand 1, single buffered']
    #allocation4 [shape = 's32[1]{0}', space=sflag, size = 0x4, scoped, tag = 'scoped memory for tpu_custom_call.1']
    #allocation5 [shape = 'u8[6144]{0}', space=vmem, size = 0x1800, scoped, tag = 'input window, operand 2, single buffered']
    #allocation6 [shape = 's32[1]{0}', space=sflag, size = 0x4, scoped, tag = 'scoped memory for tpu_custom_call.1']
    #allocation7 [shape = 'u8[512]{0}', space=vmem, size = 0x400, scoped, tag = 'input window, operand 6, single buffered']
    %15 = vsyncpa [#allocation4], 0
    %16 = vsyncpa [#allocation6], 0
    // Predicated region
    $region2: #{tpu_custom_call.1} parent=1 // pred_check
      _
    $region3: #{tpu_custom_call.1} parent=1 // pred_check_branch
      %18 = sbr.rel (0) target = $region5
    $region4: #{tpu_custom_call.1} parent=1 // pred_region
      _
    $region5: #{tpu_custom_call.1} parent=1 // pred_fallthru
      _
    // Predicated region
    $region6: #{tpu_custom_call.1} parent=1 // pred_check
      _
    $region7: #{tpu_custom_call.1} parent=1 // pred_check_branch
      %20 = sbr.rel (0) target = $region9
    $region8: #{tpu_custom_call.1} parent=1 // pred_region
      %22 = vsyncadd [#allocation4], 0
      %s24 = sshll.u32 %s1, 4
      %s25 = int_to_ptr.hbm [resolvable:$true] %s24
      %s26 = sshll.u32 [#allocation3], 4
      %s27 = int_to_ptr.vmem [resolvable:$true] %s26
      %29 = dma.hbm_to_vmem [thread:$0]  %s25, 32, %s27, [#allocation4]
    $region9: #{tpu_custom_call.1} parent=1 // pred_fallthru
      _
    // Predicated region
    $region10: #{tpu_custom_call.1} parent=1 // pred_check
      _
    $region11: #{tpu_custom_call.1} parent=1 // pred_check_branch
      %31 = sbr.rel (0) target = $region13
    $region12: #{tpu_custom_call.1} parent=1 // pred_region
      %33 = vsyncadd [#allocation6], 0
      %s34 = sshll.u32 %s2, 4
      %s35 = int_to_ptr.hbm [resolvable:$true] %s34
      %s36 = sshll.u32 [#allocation5], 4
      %s37 = int_to_ptr.vmem [resolvable:$true] %s36
      %42 = dma.hbm_to_vmem [thread:$0]  %s35, 192, %s37, [#allocation6], 64, 64, 4
    $region13: #{tpu_custom_call.1} parent=1 // pred_fallthru
      _
    // Predicated region
    $region14: #{tpu_custom_call.1} parent=1 // pred_check
      _
    $region15: #{tpu_custom_call.1} parent=1 // pred_check_branch
      %44 = sbr.rel (0) target = $region17
    $region16: #{tpu_custom_call.1} parent=1 // pred_region
      _
    $region17: #{tpu_custom_call.1} parent=1 // pred_fallthru
      _
    // Predicated region
    $region18: #{tpu_custom_call.1} parent=1 // pred_check
      _
    $region19: #{tpu_custom_call.1} parent=1 // pred_check_branch
      %46 = sbr.rel (0) target = $region21
    $region20: #{tpu_custom_call.1} parent=1 // pred_region
      _
    $region21: #{tpu_custom_call.1} parent=1 // pred_fallthru
      _
    // Predicated region
    $region22: #{tpu_custom_call.1} parent=1 // pred_check
      _
    $region23: #{tpu_custom_call.1} parent=1 // pred_check_branch
      %48 = sbr.rel (0) target = $region25
    $region24: #{tpu_custom_call.1} parent=1 // pred_region
      _
    $region25: #{tpu_custom_call.1} parent=1 // pred_fallthru
      _
    // Predicated region
    $region26: #{tpu_custom_call.1} parent=1 // pred_check
      _
    $region27: #{tpu_custom_call.1} parent=1 // pred_check_branch
      %50 = sbr.rel (0) target = $region29
    $region28: #{tpu_custom_call.1} parent=1 // pred_region
      %52 = vsyncadd [#allocation6], 0
      %s54 = sshll.u32 %s6, 4
      %s55 = int_to_ptr.hbm [resolvable:$true] %s54
      %s56 = sshll.u32 [#allocation7], 4
      %s57 = int_to_ptr.vmem [resolvable:$true] %s56
      %59 = dma.hbm_to_vmem [thread:$0]  %s55, 16, %s57, [#allocation6]
    $region29: #{tpu_custom_call.1} parent=1 // pred_fallthru
      _
    // Predicated region
    $region30: #{tpu_custom_call.1} parent=1 // pred_check
      _
    $region31: #{tpu_custom_call.1} parent=1 // pred_check_branch
      %61 = sbr.rel (0) target = $region33
    $region32: #{tpu_custom_call.1} parent=1 // pred_region
      _
    $region33: #{tpu_custom_call.1} parent=1 // pred_fallthru
      _
    // Predicated region
    $region34: #{tpu_custom_call.1} parent=1 // pred_check
      _
    $region35: #{tpu_custom_call.1} parent=1 // pred_check_branch
      %63 = sbr.rel (0) target = $region37
    $region36: #{tpu_custom_call.1} parent=1 // pred_region
      _
    $region37: #{tpu_custom_call.1} parent=1 // pred_fallthru
      _
    // Predicated region
    $region38: #{tpu_custom_call.1} parent=1 // pred_check
      _
    $region39: #{tpu_custom_call.1} parent=1 // pred_check_branch
      %65 = sbr.rel (0) target = $region41
    $region40: #{tpu_custom_call.1} parent=1 // pred_region
      %67 = dma.done [#allocation4], 32
    $region41: #{tpu_custom_call.1} parent=1 // pred_fallthru
      _
    // Predicated region
    $region42: #{tpu_custom_call.1} parent=1 // pred_check
      _
    $region43: #{tpu_custom_call.1} parent=1 // pred_check_branch
      %69 = sbr.rel (0) target = $region45
    $region44: #{tpu_custom_call.1} parent=1 // pred_region
      %71 = dma.done [#allocation6], 192
    $region45: #{tpu_custom_call.1} parent=1 // pred_fallthru
      _
    // Predicated region
    $region46: #{tpu_custom_call.1} parent=1 // pred_check
      _
    $region47: #{tpu_custom_call.1} parent=1 // pred_check_branch
      %73 = sbr.rel (0) target = $region49
    $region48: #{tpu_custom_call.1} parent=1 // pred_region
      %75 = dma.done [#allocation6], 16
    $region49: #{tpu_custom_call.1} parent=1 // pred_fallthru
      _
    %v77 = vld [vmem:[%s0] sm:$0x3]
    %v78 = vpack.c.bf16 %v77, %v77
    %v79 = vld [vmem:[#allocation3] sm:$0x3]
    %v80 = vpack.c.bf16 %v79, %v79
    %v81 = vld [vmem:[#allocation5] sm:$0xf]
    %v82 = vld [vmem:[#allocation5 + $0x4] sm:$0xf]
    %v83 = vld [vmem:[#allocation5 + $0x8] sm:$0xf]
    %v84 = vld [vmem:[%s3] sm:$0xf]
    %vm85 = vcmask 64512
    %v87 = vsel %vm85, %v80, 0
    %vm89 = vcmask 1043456
    %v91 = vsel %vm89, %v84, 0
    %93 = vmatpush.bf16.msra.mxu0 0
    %94 = vmatpush.bf16.msra.mxu0 0
    %95 = vmatpush.bf16.msra.mxu0 0
    %96 = vmatpush.bf16.msra.mxu0 0
    %97 = vmatpush.bf16.msra.mxu0 0
    %98 = vmatpush.bf16.msra.mxu0 0
    %99 = vmatpush.bf16.msra.mxu0 0
    %100 = vmatpush.bf16.msra.mxu0 %v91
    %101 = vmatmul.bf16.gmra.mxu0 %v87
    %v102 = vpop.f32.mrf.mxu0
    %v103 = vadd.f32 0.0, %v102
    %v104 = vpop.f32.mrf.mxu0
    %105 = vdwg.mxu0
    %v109 = vunpack.c.l.b16 %v81
    %v110 = vunpack.c.l.b16 %v82
    %v111 = vunpack.c.l.b16 %v83
    %v112 = vpack.c.b16 %v110, %v109
    %v113 = vpack.c.b16 %v111, %v111
    %vm115 = vcmask 195584
    %v117 = vsel %vm115, %v78, 0
    %v120 = vsel %vm89, %v113, 0
    %122 = vmatpush.bf16.msra.mxu0 0
    %123 = vmatpush.bf16.msra.mxu0 0
    %124 = vmatpush.bf16.msra.mxu0 0
    %125 = vmatpush.bf16.msra.mxu0 0
    %126 = vmatpush.bf16.msra.mxu0 0
    %127 = vmatpush.bf16.msra.mxu0 0
    %128 = vmatpush.bf16.msra.mxu0 %v120
    %129 = vmatpush.bf16.msra.mxu0 %v112
    %130 = vmatmul.bf16.gmra.mxu0 %v117
    %v131 = vpop.f32.mrf.mxu0
    %v132 = vadd.f32 %v103, %v131
    %v133 = vpop.f32.mrf.mxu0
    %134 = vdwg.mxu0
    %v135 = vld [vmem:[%s4] sm:$0x1]
    %v137 = vperm.slane %v135, 0
    %v139 = vadd.f32 %v132, %v137
    %v140 = vmax.f32 %v139, 0.0
    %v141 = vpack.c.bf16 %v140, %v140
    %v142 = vld [vmem:[%s5] sm:$0xf]
    %v143 = vld [vmem:[%s5 + $0x4] sm:$0xf]
    %v144 = vld [vmem:[%s5 + $0x8] sm:$0xf]
    %v145 = vld [vmem:[%s5 + $0xc] sm:$0xf]
    %v146 = vld [vmem:[%s5 + $0x10] sm:$0xf]
    %v147 = vld [vmem:[%s5 + $0x14] sm:$0xf]
    %v148 = vld [vmem:[%s5 + $0x18] sm:$0xf]
    %v149 = vld [vmem:[%s5 + $0x1c] sm:$0xf]
    %v150 = vld [vmem:[%s5 + $0x20] sm:$0xf]
    %v151 = vld [vmem:[%s5 + $0x24] sm:$0xf]
    %v152 = vld [vmem:[%s5 + $0x28] sm:$0xf]
    %v153 = vld [vmem:[%s5 + $0x2c] sm:$0xf]
    %v154 = vld [vmem:[%s5 + $0x30] sm:$0xf]
    %v155 = vld [vmem:[%s5 + $0x34] sm:$0xf]
    %v156 = vld [vmem:[%s5 + $0x38] sm:$0xf]
    %v157 = vld [vmem:[%s5 + $0x3c] sm:$0xf]
    %v158 = vld [vmem:[#allocation7] sm:$0x1]
    %v160 = vperm.slane %v158, 0
    %v178 = vunpack.c.l.b16 %v142
    %v179 = vunpack.c.l.b16 %v143
    %v180 = vunpack.c.l.b16 %v144
    %v181 = vunpack.c.l.b16 %v145
    %v182 = vunpack.c.l.b16 %v146
    %v183 = vunpack.c.l.b16 %v147
    %v184 = vunpack.c.l.b16 %v148
    %v185 = vunpack.c.l.b16 %v149
    %v186 = vunpack.c.l.b16 %v150
    %v187 = vunpack.c.l.b16 %v151
    %v188 = vunpack.c.l.b16 %v152
    %v189 = vunpack.c.l.b16 %v153
    %v190 = vunpack.c.l.b16 %v154
    %v191 = vunpack.c.l.b16 %v155
    %v192 = vunpack.c.l.b16 %v156
    %v193 = vunpack.c.l.b16 %v157
    %v194 = vpack.c.b16 %v179, %v178
    %v195 = vpack.c.b16 %v181, %v180
    %v196 = vpack.c.b16 %v183, %v182
    %v197 = vpack.c.b16 %v185, %v184
    %v198 = vpack.c.b16 %v187, %v186
    %v199 = vpack.c.b16 %v189, %v188
    %v200 = vpack.c.b16 %v191, %v190
    %v201 = vpack.c.b16 %v193, %v192
    %210 = vmatpush.bf16.msra.mxu0 %v201
    %211 = vmatpush.bf16.msra.mxu0 %v200
    %212 = vmatpush.bf16.msra.mxu0 %v199
    %213 = vmatpush.bf16.msra.mxu0 %v198
    %214 = vmatpush.bf16.msra.mxu0 %v197
    %215 = vmatpush.bf16.msra.mxu0 %v196
    %216 = vmatpush.bf16.msra.mxu0 %v195
    %217 = vmatpush.bf16.msra.mxu0 %v194
    %218 = vmatmul.bf16.gmra.mxu0 %v141
    %v219 = vpop.f32.mrf.mxu0
    %v220 = vadd.f32 %v160, %v219
    %v221 = vpop.f32.mrf.mxu0
    %222 = vdwg.mxu0
    %v223 = vmax.f32 %v220, 0.0
    %v224 = vpack.c.bf16 %v223, %v223
    %v225 = vld [vmem:[%s7] sm:$0xf]
    %v226 = vld [vmem:[%s7 + $0x4] sm:$0xf]
    %v227 = vld [vmem:[%s7 + $0x8] sm:$0xf]
    %v228 = vld [vmem:[%s7 + $0xc] sm:$0xf]
    %v229 = vld [vmem:[%s7 + $0x10] sm:$0xf]
    %v230 = vld [vmem:[%s7 + $0x14] sm:$0xf]
    %v231 = vld [vmem:[%s7 + $0x18] sm:$0xf]
    %v232 = vld [vmem:[%s7 + $0x1c] sm:$0xf]
    %v233 = vld [vmem:[%s7 + $0x20] sm:$0xf]
    %v234 = vld [vmem:[%s7 + $0x24] sm:$0xf]
    %v235 = vld [vmem:[%s7 + $0x28] sm:$0xf]
    %v236 = vld [vmem:[%s7 + $0x2c] sm:$0xf]
    %v237 = vld [vmem:[%s7 + $0x30] sm:$0xf]
    %v238 = vld [vmem:[%s7 + $0x34] sm:$0xf]
    %v239 = vld [vmem:[%s7 + $0x38] sm:$0xf]
    %v240 = vld [vmem:[%s7 + $0x3c] sm:$0xf]
    %s241 = sld [smem:[#allocation2]]
    %v242 = vstv %s241
    %v259 = vunpack.c.l.b16 %v225
    %v260 = vunpack.c.l.b16 %v226
    %v261 = vunpack.c.l.b16 %v227
    %v262 = vunpack.c.l.b16 %v228
    %v263 = vunpack.c.l.b16 %v229
    %v264 = vunpack.c.l.b16 %v230
    %v265 = vunpack.c.l.b16 %v231
    %v266 = vunpack.c.l.b16 %v232
    %v267 = vunpack.c.l.b16 %v233
    %v268 = vunpack.c.l.b16 %v234
    %v269 = vunpack.c.l.b16 %v235
    %v270 = vunpack.c.l.b16 %v236
    %v271 = vunpack.c.l.b16 %v237
    %v272 = vunpack.c.l.b16 %v238
    %v273 = vunpack.c.l.b16 %v239
    %v274 = vunpack.c.l.b16 %v240
    %v275 = vpack.c.b16 %v260, %v259
    %v276 = vpack.c.b16 %v262, %v261
    %v277 = vpack.c.b16 %v264, %v263
    %v278 = vpack.c.b16 %v266, %v265
    %v279 = vpack.c.b16 %v268, %v267
    %v280 = vpack.c.b16 %v270, %v269
    %v281 = vpack.c.b16 %v272, %v271
    %v282 = vpack.c.b16 %v274, %v273
    %291 = vmatpush.bf16.msra.mxu0 %v282
    %292 = vmatpush.bf16.msra.mxu0 %v281
    %293 = vmatpush.bf16.msra.mxu0 %v280
    %294 = vmatpush.bf16.msra.mxu0 %v279
    %295 = vmatpush.bf16.msra.mxu0 %v278
    %296 = vmatpush.bf16.msra.mxu0 %v277
    %297 = vmatpush.bf16.msra.mxu0 %v276
    %298 = vmatpush.bf16.msra.mxu0 %v275
    %299 = vmatmul.bf16.gmra.mxu0 %v224
    %v300 = vpop.f32.mrf.mxu0
    %v301 = vadd.f32 %v242, %v300
    %v302 = vpop.f32.mrf.mxu0
    %303 = vdwg.mxu0
    %vm304 = vcmask 1024
    %305 = vst.msk [vmem:[%s9] sm:$0x3] %vm304, %v301
    // Predicated region
    $region50: #{tpu_custom_call.1} parent=1 // pred_check
      _
    $region51: #{tpu_custom_call.1} parent=1 // pred_check_branch
      %307 = sbr.rel (0) target = $region53
    $region52: #{tpu_custom_call.1} parent=1 // pred_region
      _
    $region53: #{tpu_custom_call.1} parent=1 // pred_fallthru
      _
    // Predicated region
    $region54: #{tpu_custom_call.1} parent=1 // pred_check
      _
    $region55: #{tpu_custom_call.1} parent=1 // pred_check_branch
      %309 = sbr.rel (0) target = $region57
    $region56: #{tpu_custom_call.1} parent=1 // pred_region
      _
    $region57: #{tpu_custom_call.1} parent=1 // pred_fallthru
      _
    %310 = vsyncpa [#allocation4], 1
    %311 = vsyncpa [#allocation6], 1

</llo_original>
